<compile_context>
chip_gen: v7x
topology: tpu7x:2x2x1
jax: 0.10.0
libtpu: 0.0.40
codegen_flags: <defaults>
</compile_context>

<pallas_src>
import functools

import jax
import jax.numpy as jnp
from jax.experimental import pallas as pl
from jax.experimental.pallas import tpu as pltpu

_LANE = 128


def _cdiv(a, b):
    return -(-a // b)


def _round_up(x, m):
    return ((x + m - 1) // m) * m


def _sublane(dtype):
    # Minimum second-to-last tile granularity per dtype packing.
    return {4: 8, 2: 16, 1: 32}.get(jnp.dtype(dtype).itemsize, 8)


def _contrib(z_ref, y_ref, eps, approx):
    """Per-element |y - z| / (y + eps) in f32 (inputs may be bf16/int8/fp8)."""
    z = z_ref[...].astype(jnp.float32)
    y = y_ref[...].astype(jnp.float32)
    d = jnp.abs(y - z)
    if approx:
        # One EUP push in an otherwise idle slot (v7x / bf16 regime).
        return d * pl.reciprocal(y + jnp.float32(eps), approx=True)
    return d / (y + jnp.float32(eps))


# --------------------------------------------------------------------------
# mean / sum path: one global element sum over the flat (rows, 128) stream.
# Grid: (chunk ["parallel"], row-chunk k ["arbitrary"]).
# --------------------------------------------------------------------------
def _global_sum_kernel(z_ref, y_ref, o_ref, acc_ref, *, eps, rows, tr, steps, approx):
    ci = pl.program_id(0)
    ki = pl.program_id(1)

    @pl.when(ki == 0)
    def _():
        acc_ref[...] = jnp.zeros_like(acc_ref)

    c = _contrib(z_ref, y_ref, eps, approx)          # (tr, 128) f32
    row0 = (ci * steps + ki) * tr                    # logical first row of this block

    @pl.when(row0 + tr <= rows)                      # steady state: no mask work
    def _():
        acc_ref[...] += jnp.sum(c, axis=0, keepdims=True)

    @pl.when(row0 + tr > rows)                       # clamped / redirected block
    def _():
        # Mask AFTER the divide so garbage rows of the clamped block are discarded.
        ridx = row0 + jax.lax.broadcasted_iota(jnp.int32, c.shape, 0)
        cm = jnp.where(ridx < rows, c, 0.0)
        acc_ref[...] += jnp.sum(cm, axis=0, keepdims=True)

    @pl.when(ki == pl.num_programs(1) - 1)
    def _():
        # Single cross-lane reduce + one tiny store per chunk.
        o_ref[...] = jnp.sum(acc_ref[...], axis=1, keepdims=True)


def _global_sum(z2, y2, *, eps, rows, tr, p, steps, nb, approx):
    """z2, y2: (rows, 128).  Returns scalar f32 sum of |y-z|/(y+eps)."""

    def blk_idx(ci, ki):
        # Clamp overshoot steps of the last chunk onto the last valid block;
        # their contribution is masked to zero in-kernel via the logical index.
        return (jnp.minimum(ci * steps + ki, nb - 1), 0)

    out = pl.pallas_call(
        functools.partial(_global_sum_kernel, eps=eps, rows=rows, tr=tr,
                          steps=steps, approx=approx),
        out_shape=jax.ShapeDtypeStruct((p, 1), jnp.float32),
        grid_spec=pltpu.PrefetchScalarGridSpec(
            num_scalar_prefetch=0,
            grid=(p, steps),
            in_specs=[pl.BlockSpec((tr, _LANE), blk_idx),
                      pl.BlockSpec((tr, _LANE), blk_idx)],
            out_specs=pl.BlockSpec((1, 1), lambda ci, ki: (ci, 0)),
            scratch_shapes=[pltpu.VMEM((1, _LANE), jnp.float32)],
        ),
        compiler_params=pltpu.CompilerParams(
            dimension_semantics=("parallel", "arbitrary"),
            vmem_limit_bytes=32 * 1024 * 1024,
        ),
    )(z2, y2)
    return jnp.sum(out)


# --------------------------------------------------------------------------
# "none" path: per-sample sums.  Blocks tb samples x tr rows x 128 lanes.
# Grid: (batch-chunk ["parallel"], row-chunk ["arbitrary"]).
# --------------------------------------------------------------------------
def _per_sample_kernel(z_ref, y_ref, o_ref, acc_ref, *, eps, rows, tr, approx):
    ki = pl.program_id(1)

    @pl.when(ki == 0)
    def _():
        acc_ref[...] = jnp.zeros_like(acc_ref)

    c = _contrib(z_ref, y_ref, eps, approx)          # (tb, tr, 128) f32
    row0 = ki * tr

    @pl.when(row0 + tr <= rows)
    def _():
        acc_ref[...] += jnp.sum(c, axis=1, keepdims=True)

    @pl.when(row0 + tr > rows)
    def _():
        ridx = row0 + jax.lax.broadcasted_iota(jnp.int32, c.shape, 1)
        cm = jnp.where(ridx < rows, c, 0.0)
        acc_ref[...] += jnp.sum(cm, axis=1, keepdims=True)

    @pl.when(ki == pl.num_programs(1) - 1)
    def _():
        o_ref[...] = jnp.sum(acc_ref[...], axis=2, keepdims=True)   # (tb, 1, 1)


def _per_sample_sums(z3, y3, *, eps, tb, tr, approx):
    """z3, y3: (B, rows, 128).  Returns (B,) f32 per-sample sums."""
    b, rows, lane = z3.shape
    out = pl.pallas_call(
        functools.partial(_per_sample_kernel, eps=eps, rows=rows, tr=tr, approx=approx),
        out_shape=jax.ShapeDtypeStruct((b, 1, 1), jnp.float32),
        grid_spec=pltpu.PrefetchScalarGridSpec(
            num_scalar_prefetch=0,
            grid=(_cdiv(b, tb), _cdiv(rows, tr)),
            in_specs=[pl.BlockSpec((tb, tr, lane), lambda bi, ki: (bi, ki, 0)),
                      pl.BlockSpec((tb, tr, lane), lambda bi, ki: (bi, ki, 0))],
            out_specs=pl.BlockSpec((tb, 1, 1), lambda bi, ki: (bi, 0, 0)),
            scratch_shapes=[pltpu.VMEM((tb, 1, lane), jnp.float32)],
        ),
        compiler_params=pltpu.CompilerParams(
            dimension_semantics=("parallel", "arbitrary"),
            vmem_limit_bytes=32 * 1024 * 1024,
        ),
    )(z3, y3)
    return out[:, 0, 0]


# --------------------------------------------------------------------------
# Wrapper
# --------------------------------------------------------------------------
def absolute_relative_loss(z, y, *, reduction="mean", eps=1e-8,
                           block_bytes=4 << 20, approx_reciprocal=False):
    if reduction not in ("mean", "sum", "none"):
        raise Exception('Argument "reduction" must be "mean", "sum" or "none"!')
    assert z.shape == y.shape

    b = y.shape[0]
    n = 1
    for d in y.shape[1:]:
        n *= d

    sub = max(_sublane(z.dtype), _sublane(y.dtype))
    isz = max(jnp.dtype(z.dtype).itemsize, jnp.dtype(y.dtype).itemsize)
    # ~block_bytes of HBM per input per grid step (8192 rows for f32, 16384 for bf16).
    target_rows = max(sub, (block_bytes // (_LANE * isz)) // sub * sub)

    if reduction == "none":
        n_pad = _round_up(n, _LANE)
        z2 = z.reshape(b, n)
        y2 = y.reshape(b, n)
        if n_pad != n:
            # TODO(synk): lane-ragged per-sample size; this same-value pad (zero
            # contribution) is a full HBM copy — only taken when n % 128 != 0.
            z2 = jnp.concatenate([z2, jnp.ones((b, n_pad - n), z2.dtype)], axis=1)
            y2 = jnp.concatenate([y2, jnp.ones((b, n_pad - n), y2.dtype)], axis=1)
        rows = n_pad // _LANE
        if rows >= target_rows:
            tr, tb = target_rows, 1
        else:
            tr = rows                                    # full dim -> always a legal block
            tb = min(b, max(1, target_rows // rows), 4096)   # batch several samples per step
        z3 = z2.reshape(b, rows, _LANE)
        y3 = y2.reshape(b, rows, _LANE)
        sums = _per_sample_sums(z3, y3, eps=eps, tb=tb, tr=tr, approx=approx_reciprocal)
        return sums / jnp.float32(n)

    # mean / sum: per-sample n is identical, so the loss collapses to ONE global
    # element sum over the flattened tensor.
    t = b * n
    zf = z.reshape(-1)
    yf = y.reshape(-1)
    t_pad = _round_up(t, _LANE)
    if t_pad != t:
        # TODO(synk): lane-ragged total size; same-value pad is a full HBM copy
        # — only taken when (B * n) % 128 != 0.
        zf = jnp.concatenate([zf, jnp.ones((t_pad - t,), zf.dtype)])
        yf = jnp.concatenate([yf, jnp.ones((t_pad - t,), yf.dtype)])
    rows = t_pad // _LANE

    # Split into 2 independent "parallel" chunks on mid/large inputs so both v7x
    # TensorCores stream HBM (no-op on single-TC v5e/v6e).
    p = 2 if (t_pad >= (1 << 19) and rows >= 2 * sub) else 1
    if p == 2:
        tr = min(target_rows, _round_up(_cdiv(rows, 2), sub))
    else:
        tr = min(target_rows, rows)
    nb = _cdiv(rows, tr)          # total row blocks
    steps = _cdiv(nb, p)          # row blocks per chunk

    z2 = zf.reshape(rows, _LANE)
    y2 = yf.reshape(rows, _LANE)
    total = _global_sum(z2, y2, eps=eps, rows=rows, tr=tr, p=p, steps=steps, nb=nb,
                        approx=approx_reciprocal)

    if reduction == "mean":
        return total / jnp.float32(b * n)
    return total / jnp.float32(n)                        # "sum"


def _reference(z, y, reduction="mean", eps=1e-8):
    n = 1
    for d in y.shape[1:]:
        n *= d
    per = jnp.sum(jnp.abs(y - z) / (y + eps), axis=tuple(range(1, y.ndim))) / n
    if reduction == "mean":
        return jnp.mean(per)
    if reduction == "sum":
        return jnp.sum(per)
    return per


if __name__ == "__main__":
    key = jax.random.PRNGKey(0)
    kz, ky = jax.random.split(key)
    # NCHW like PyTorch: batch=2, channels=4, spatial=16x16
    shape = (2, 4, 16, 16)
    # Keep y positive-ish (typical for relative losses) so the division is well
    # behaved; semantics match PyTorch regardless.
    y = jax.random.uniform(ky, shape, dtype=jnp.float32, minval=0.5, maxval=2.0)
    z = y + 0.1 * jax.random.normal(kz, shape, dtype=jnp.float32)

    for reduction in ("mean", "sum", "none"):
        out = jax.block_until_ready(absolute_relative_loss(z, y, reduction=reduction))
        ref = _reference(z, y, reduction=reduction)
        assert jnp.allclose(out, ref, rtol=1e-5, atol=1e-6), (reduction, out, ref)

    print("KERNEL_OK")
</pallas_src>

<mosaic_0001>
module attributes {stable_mosaic.version = 11 : i64} {
  func.func @_global_sum_kernel(%arg0: i32, %arg1: i32, %arg2: memref<16x128xf32, #tpu.memory_space<vmem>>, %arg3: memref<16x128xf32, #tpu.memory_space<vmem>>, %arg4: memref<1x1xf32, #tpu.memory_space<vmem>>, %arg5: memref<1x128xf32, #tpu.memory_space<vmem>>) attributes {dimension_semantics = [#tpu.dimension_semantics<parallel>, #tpu.dimension_semantics<arbitrary>], iteration_bounds = array<i64: 1, 1>, scalar_prefetch = 0 : i64, scratch_operands = 1 : i64, tpu.core_type = #tpu.core_type<tc>, window_params = [{transform_indices = @transform_0, window_bounds = array<i64: 16, 128>}, {transform_indices = @transform_1, window_bounds = array<i64: 16, 128>}, {transform_indices = @transform_2, window_bounds = array<i64: 1, 1>}]} {
    %c0_i32 = arith.constant 0 : i32
    %0 = arith.cmpi eq, %arg1, %c0_i32 : i32
    %1 = arith.extui %0 : i1 to i32
    %c0_i32_0 = arith.constant 0 : i32
    %2 = arith.cmpi ne, %1, %c0_i32_0 : i32
    scf.if %2 {
      %cst_12 = arith.constant 0.000000e+00 : f32
      %24 = vector.broadcast %cst_12 : f32 to vector<1x128xf32>
      %c0_13 = arith.constant 0 : index
      %c0_14 = arith.constant 0 : index
      %25 = vector.load %arg5[%c0_13, %c0_14] : memref<1x128xf32, #tpu.memory_space<vmem>>, vector<1x128xf32>
      tpu.vector_store %arg5[%c0_13, %c0_14], %24 {strides = array<i32>} : memref<1x128xf32, #tpu.memory_space<vmem>>, vector<1x128xf32>,
    } else {
    }
    %c0 = arith.constant 0 : index
    %c0_1 = arith.constant 0 : index
    %3 = vector.load %arg2[%c0, %c0_1] : memref<16x128xf32, #tpu.memory_space<vmem>>, vector<16x128xf32>
    %c0_2 = arith.constant 0 : index
    %c0_3 = arith.constant 0 : index
    %4 = vector.load %arg3[%c0_2, %c0_3] : memref<16x128xf32, #tpu.memory_space<vmem>>, vector<16x128xf32>
    %5 = arith.subf %4, %3 : vector<16x128xf32>
    %6 = math.absf %5 : vector<16x128xf32>
    %cst = arith.constant 9.99999993E-9 : f32
    %7 = vector.broadcast %cst : f32 to vector<16x128xf32>
    %8 = arith.addf %4, %7 : vector<16x128xf32>
    %9 = arith.divf %6, %8 : vector<16x128xf32>
    %c1_i32 = arith.constant 1 : i32
    %10 = arith.muli %arg0, %c1_i32 : i32
    %11 = arith.addi %10, %arg1 : i32
    %c16_i32 = arith.constant 16 : i32
    %12 = arith.muli %11, %c16_i32 : i32
    %c16_i32_4 = arith.constant 16 : i32
    %13 = arith.addi %12, %c16_i32_4 : i32
    %c16_i32_5 = arith.constant 16 : i32
    %14 = arith.cmpi sle, %13, %c16_i32_5 : i32
    %15 = arith.extui %14 : i1 to i32
    %c0_i32_6 = arith.constant 0 : i32
    %16 = arith.cmpi ne, %15, %c0_i32_6 : i32
    scf.if %16 {
      %c0_12 = arith.constant 0 : index
      %c0_13 = arith.constant 0 : index
      %24 = vector.load %arg5[%c0_12, %c0_13] : memref<1x128xf32, #tpu.memory_space<vmem>>, vector<1x128xf32>
      %cst_14 = arith.constant dense<0.000000e+00> : vector<128xf32>
      %25 = vector.multi_reduction <add>, %9, %cst_14 [0] : vector<16x128xf32> to vector<128xf32>
      %26 = vector.shape_cast %25 : vector<128xf32> to vector<1x128xf32>
      %27 = arith.addf %24, %26 : vector<1x128xf32>
      %c0_15 = arith.constant 0 : index
      %c0_16 = arith.constant 0 : index
      %28 = vector.load %arg5[%c0_15, %c0_16] : memref<1x128xf32, #tpu.memory_space<vmem>>, vector<1x128xf32>
      tpu.vector_store %arg5[%c0_15, %c0_16], %27 {strides = array<i32>} : memref<1x128xf32, #tpu.memory_space<vmem>>, vector<1x128xf32>,
    } else {
    }
    %c16_i32_7 = arith.constant 16 : i32
    %17 = arith.addi %12, %c16_i32_7 : i32
    %c16_i32_8 = arith.constant 16 : i32
    %18 = arith.cmpi sgt, %17, %c16_i32_8 : i32
    %19 = arith.extui %18 : i1 to i32
    %c0_i32_9 = arith.constant 0 : i32
    %20 = arith.cmpi ne, %19, %c0_i32_9 : i32
    scf.if %20 {
      %24 = tpu.iota {dimensions = array<i32: 0>} : vector<16x128xi32>
      %25 = vector.broadcast %12 : i32 to vector<16x128xi32>
      %26 = arith.addi %25, %24 : vector<16x128xi32>
      %c16_i32_12 = arith.constant 16 : i32
      %27 = vector.broadcast %c16_i32_12 : i32 to vector<16x128xi32>
      %28 = arith.cmpi slt, %26, %27 : vector<16x128xi32>
      %cst_13 = arith.constant 0.000000e+00 : f32
      %29 = vector.broadcast %cst_13 : f32 to vector<16x128xf32>
      %30 = arith.select %28, %9, %29 : vector<16x128xi1>, vector<16x128xf32>
      %c0_14 = arith.constant 0 : index
      %c0_15 = arith.constant 0 : index
      %31 = vector.load %arg5[%c0_14, %c0_15] : memref<1x128xf32, #tpu.memory_space<vmem>>, vector<1x128xf32>
      %cst_16 = arith.constant dense<0.000000e+00> : vector<128xf32>
      %32 = vector.multi_reduction <add>, %30, %cst_16 [0] : vector<16x128xf32> to vector<128xf32>
      %33 = vector.shape_cast %32 : vector<128xf32> to vector<1x128xf32>
      %34 = arith.addf %31, %33 : vector<1x128xf32>
      %c0_17 = arith.constant 0 : index
      %c0_18 = arith.constant 0 : index
      %35 = vector.load %arg5[%c0_17, %c0_18] : memref<1x128xf32, #tpu.memory_space<vmem>>, vector<1x128xf32>
      tpu.vector_store %arg5[%c0_17, %c0_18], %34 {strides = array<i32>} : memref<1x128xf32, #tpu.memory_space<vmem>>, vector<1x128xf32>,
    } else {
    }
    %c0_i32_10 = arith.constant 0 : i32
    %21 = arith.cmpi eq, %arg1, %c0_i32_10 : i32
    %22 = arith.extui %21 : i1 to i32
    %c0_i32_11 = arith.constant 0 : i32
    %23 = arith.cmpi ne, %22, %c0_i32_11 : i32
    scf.if %23 {
      %c0_12 = arith.constant 0 : index
      %c0_13 = arith.constant 0 : index
      %24 = vector.load %arg5[%c0_12, %c0_13] : memref<1x128xf32, #tpu.memory_space<vmem>>, vector<1x128xf32>
      %cst_14 = arith.constant dense<0.000000e+00> : vector<1xf32>
      %25 = vector.multi_reduction <add>, %24, %cst_14 [1] : vector<1x128xf32> to vector<1xf32>
      %26 = vector.shape_cast %25 : vector<1xf32> to vector<1x1xf32>
      %c0_15 = arith.constant 0 : index
      %c0_16 = arith.constant 0 : index
      %27 = vector.load %arg4[%c0_15, %c0_16] : memref<1x1xf32, #tpu.memory_space<vmem>>, vector<1x1xf32>
      tpu.vector_store %arg4[%c0_15, %c0_16], %26 {strides = array<i32>} : memref<1x1xf32, #tpu.memory_space<vmem>>, vector<1x1xf32>,
    } else {
    }
    return
  }
  func.func @transform_0(%arg0: i32, %arg1: i32) -> (i32, i32) {
    %c1_i32 = arith.constant 1 : i32
    %0 = arith.muli %arg0, %c1_i32 : i32
    %1 = arith.addi %0, %arg1 : i32
    %c0_i32 = arith.constant 0 : i32
    %2 = arith.minsi %1, %c0_i32 : i32
    %c0_i32_0 = arith.constant 0 : i32
    %c0_i32_1 = arith.constant 0 : i32
    return %2, %c0_i32_0 : i32, i32
  }
  func.func @transform_1(%arg0: i32, %arg1: i32) -> (i32, i32) {
    %c1_i32 = arith.constant 1 : i32
    %0 = arith.muli %arg0, %c1_i32 : i32
    %1 = arith.addi %0, %arg1 : i32
    %c0_i32 = arith.constant 0 : i32
    %2 = arith.minsi %1, %c0_i32 : i32
    %c0_i32_0 = arith.constant 0 : i32
    %c0_i32_1 = arith.constant 0 : i32
    return %2, %c0_i32_0 : i32, i32
  }
  func.func @transform_2(%arg0: i32, %arg1: i32) -> (i32, i32) {
    %c0_i32 = arith.constant 0 : i32
    %c0_i32_0 = arith.constant 0 : i32
    return %arg0, %c0_i32 : i32, i32
  }
}

</mosaic_0001>

<llo_original>
// kernel: tpu_custom_call.1
$region0: #{tpu_custom_call.1}
  #allocation0 [shape = 'u32[]', space=smem, size = 0x4, offset = 0x4, fixed_abs, tag = 'smem constant byte address 0x4 - core index']
  #allocation1 [shape = 'u32[144,128]{1,0:T(1,128)}', space=vmem, size = 0x12000, scoped, tag = 'internal scratch']
  #allocation2 [shape = 'f32[1,128]{1,0:T(1,128)}', space=vmem, size = 0x200, scoped, tag = 'scratch operand']
  %s0 = inlined_call_operand.hbm [shape: f32[16,128], index: 0, kind: input, shape index: {}]
  %s1 = inlined_call_operand.hbm [shape: f32[16,128], index: 1, kind: input, shape index: {}]
  %s2 = inlined_call_operand.hbm [shape: f32[1,1], index: 2, kind: output, shape index: {}]
  %s3 = sld [smem:[#allocation0]]
  $region42: #{tpu_custom_call.1} parent=0
    _
  %s5 = ssub.s32 1, %s3
  %s6 = scalar_select 0, %s5, %s3
  $region1: #{tpu_custom_call.1} parent=0
    #allocation3 [shape = 'u8[8192]{0}', space=vmem, size = 0x2000, scoped, tag = 'input window, operand 0, single buffered']
    #allocation4 [shape = 's32[1]{0}', space=sflag, size = 0x4, scoped, tag = 'scoped memory for tpu_custom_call.1']
    #allocation5 [shape = 's32[1]{0}', space=sflag, size = 0x4, scoped, tag = 'scoped memory for tpu_custom_call.1']
    #allocation6 [shape = 'u8[8192]{0}', space=vmem, size = 0x2000, scoped, tag = 'input window, operand 1, single buffered']
    #allocation7 [shape = 's32[1]{0}', space=sflag, size = 0x4, scoped, tag = 'scoped memory for tpu_custom_call.1']
    #allocation8 [shape = 'u8[512]{0}', space=vmem, size = 0x400, scoped, tag = 'output window, operand 0, single buffered']
    %7 = vsyncpa [#allocation4], 0
    %8 = vsyncpa [#allocation7], 0
    %9 = vsyncpa [#allocation5], 0
    // Predicated region
    $region2: #{tpu_custom_call.1} parent=1 // pred_check
      _
    $region3: #{tpu_custom_call.1} parent=1 // pred_check_branch
      %11 = sbr.rel (0) target = $region5
    $region4: #{tpu_custom_call.1} parent=1 // pred_region
      %s12 = sadd.s32 0, 0
      %p13 = scmp.lt.s32.totalorder %s12, 0
      %s14 = scalar_select %p13, %s12, 0
      %s15 = smul.u32 2, %s14
      %s17 = ssub.s32 256, 256
      %18 = vsyncadd [#allocation4], %s17
      %s19 = smul.addr %s15, 128
      %s20 = scalar_lea.hbm %s0, %s19
      %s21 = sshll.u32 [#allocation3], 4
      %s22 = int_to_ptr.vmem [resolvable:$true] %s21
      %27 = dma.hbm_to_vmem [thread:$0]  %s20, 256, %s22, [#allocation4], 128, 128, 8
    $region5: #{tpu_custom_call.1} parent=1 // pred_fallthru
      _
    // Predicated region
    $region6: #{tpu_custom_call.1} parent=1 // pred_check
      _
    $region7: #{tpu_custom_call.1} parent=1 // pred_check_branch
      %29 = sbr.rel (0) target = $region9
    $region8: #{tpu_custom_call.1} parent=1 // pred_region
      %s30 = sadd.s32 0, 0
      %p31 = scmp.lt.s32.totalorder %s30, 0
      %s32 = scalar_select %p31, %s30, 0
      %s33 = smul.u32 2, %s32
      %s35 = ssub.s32 256, 256
      %36 = vsyncadd [#allocation7], %s35
      %s37 = smul.addr %s33, 128
      %s38 = scalar_lea.hbm %s1, %s37
      %s39 = sshll.u32 [#allocation6], 4
      %s40 = int_to_ptr.vmem [resolvable:$true] %s39
      %45 = dma.hbm_to_vmem [thread:$0]  %s38, 256, %s40, [#allocation7], 128, 128, 8
    $region9: #{tpu_custom_call.1} parent=1 // pred_fallthru
      _
    // Predicated region
    $region10: #{tpu_custom_call.1} parent=1 // pred_check
      _
    $region11: #{tpu_custom_call.1} parent=1 // pred_check_branch
      %47 = sbr.rel (0) target = $region13
    $region12: #{tpu_custom_call.1} parent=1 // pred_region
      %48 = dma.done [#allocation4], 256
    $region13: #{tpu_custom_call.1} parent=1 // pred_fallthru
      _
    // Predicated region
    $region14: #{tpu_custom_call.1} parent=1 // pred_check
      _
    $region15: #{tpu_custom_call.1} parent=1 // pred_check_branch
      %50 = sbr.rel (0) target = $region17
    $region16: #{tpu_custom_call.1} parent=1 // pred_region
      %51 = dma.done [#allocation7], 256
    $region17: #{tpu_custom_call.1} parent=1 // pred_fallthru
      _
    %s52 = sadd.s32 0, 0
    %p53 = scmp.lt.s32.totalorder %s52, 0
    %s54 = scalar_select %p53, %s52, 0
    %s55 = smul.u32 2, %s54
    %s56 = sadd.s32 0, 0
    %p57 = scmp.lt.s32.totalorder %s56, 0
    %s58 = scalar_select %p57, %s56, 0
    %s59 = smul.u32 2, %s58
    %p60 = scmp.eq.s32.totalorder 0, 0
    // Predicated region
    $region18: #{tpu_custom_call.1} parent=1 // pred_check
      %p61 = pneg %p60
    $region19: #{tpu_custom_call.1} parent=1 // pred_check_branch
      %63 = sbr.rel (%p61) target = $region21
    $region20: #{tpu_custom_call.1} parent=1 // pred_region
      %64 = vst [vmem:[#allocation2] sm:$0x1] 0.0
    $region21: #{tpu_custom_call.1} parent=1 // pred_fallthru
      _
    %v65 = vld [vmem:[#allocation3] sm:$0xff]
    %v66 = vld [vmem:[#allocation3 + $0x8] sm:$0xff]
    %v67 = vld [vmem:[#allocation6] sm:$0xff]
    %v68 = vld [vmem:[#allocation6 + $0x8] sm:$0xff]
    %v69 = vsub.f32 %v67, %v65
    %v70 = vsub.f32 %v68, %v66
    %v71 = vand.u32 2147483647, %v69
    %v72 = vand.u32 2147483647, %v70
    %v73 = vadd.f32 %v67, 1e-08
    %v74 = vadd.f32 %v68, 1e-08
    %v75 = vrcp.pop %v73
    %v76 = vmul.f32 %v71, %v75
    %v77 = vrcp.pop %v74
    %v78 = vmul.f32 %v72, %v77
    %s79 = sadd.s32 0, 0
    %s80 = smul.u32 %s79, 16
    %s81 = sadd.s32 %s80, 16
    %p82 = scmp.le.s32.totalorder %s81, 16
    // Predicated region
    $region22: #{tpu_custom_call.1} parent=1 // pred_check
      %p83 = pneg %p82
    $region23: #{tpu_custom_call.1} parent=1 // pred_check_branch
      %85 = sbr.rel (%p83) target = $region25
    $region24: #{tpu_custom_call.1} parent=1 // pred_region
      %v86 = vld [vmem:[#allocation2] sm:$0x1]
      %v87 = vadd.f32 %v76, %v78
      %v88 = vrot.slane %v87, 4
      %v89 = vadd.f32 %v87, %v88
      %v90 = vrot.slane %v89, 2
      %v91 = vadd.f32 %v89, %v90
      %v92 = vrot.slane %v91, 1
      %v93 = vadd.f32 %v91, %v92
      %v94 = vadd.f32 %v86, %v93
      %95 = vst [vmem:[#allocation2] sm:$0x1] %v94
    $region25: #{tpu_custom_call.1} parent=1 // pred_fallthru
      _
    %p96 = scmp.gt.s32.totalorder %s81, 16
    // Predicated region
    $region26: #{tpu_custom_call.1} parent=1 // pred_check
      %p97 = pneg %p96
    $region27: #{tpu_custom_call.1} parent=1 // pred_check_branch
      %99 = sbr.rel (%p97) target = $region29
    $region28: #{tpu_custom_call.1} parent=1 // pred_region
      %v100 = vlaneseq
      %v101 = vshrl.u32 %v100, 7
      %v102 = vadd.s32 %v101, 8
      %v103 = vstv %s80
      %v104 = vadd.s32 %v103, %v101
      %v105 = vadd.s32 %v103, %v102
      %vm106 = vcmp.lt.s32.totalorder %v104, 16
      %vm107 = vcmp.lt.s32.totalorder %v105, 16
      %v108 = vsel %vm106, %v76, 0.0
      %v109 = vsel %vm107, %v78, 0.0
      %v110 = vld [vmem:[#allocation2] sm:$0x1]
      %v111 = vadd.f32 %v108, %v109
      %v112 = vrot.slane %v111, 4
      %v113 = vadd.f32 %v111, %v112
      %v114 = vrot.slane %v113, 2
      %v115 = vadd.f32 %v113, %v114
      %v116 = vrot.slane %v115, 1
      %v117 = vadd.f32 %v115, %v116
      %v118 = vadd.f32 %v110, %v117
      %119 = vst [vmem:[#allocation2] sm:$0x1] %v118
    $region29: #{tpu_custom_call.1} parent=1 // pred_fallthru
      _
    // Predicated region
    $region30: #{tpu_custom_call.1} parent=1 // pred_check
      %p120 = pneg %p60
    $region31: #{tpu_custom_call.1} parent=1 // pred_check_branch
      %122 = sbr.rel (%p120) target = $region33
    $region32: #{tpu_custom_call.1} parent=1 // pred_region
      %v123 = vld [vmem:[#allocation2] sm:$0x1]
      %vm124 = vcmask 1040384
      %v125 = vsel %vm124, %v123, 0.0
      %126 = vadd.xlane.f32.xlu0 %v125
      %v127 = vpop.xlane.xlu0 %126
      %vm128 = vcmask 0
      %129 = vst.msk [vmem:[#allocation8] sm:$0x1] %vm128, %v127
    $region33: #{tpu_custom_call.1} parent=1 // pred_fallthru
      _
    // Predicated region
    $region34: #{tpu_custom_call.1} parent=1 // pred_check
      _
    $region35: #{tpu_custom_call.1} parent=1 // pred_check_branch
      %131 = sbr.rel (0) target = $region37
    $region36: #{tpu_custom_call.1} parent=1 // pred_region
      %s133 = ssub.s32 16, 16
      %134 = vsyncadd [#allocation5], %s133
      %s136 = sshll.u32 [#allocation8], 4
      %s137 = int_to_ptr.vmem [resolvable:$true] %s136
      %139 = dma.vmem_to_hbm [thread:$0]  %s137, 16, %s2, [#allocation5]
    $region37: #{tpu_custom_call.1} parent=1 // pred_fallthru
      _
    // Predicated region
    $region38: #{tpu_custom_call.1} parent=1 // pred_check
      _
    $region39: #{tpu_custom_call.1} parent=1 // pred_check_branch
      %141 = sbr.rel (0) target = $region41
    $region40: #{tpu_custom_call.1} parent=1 // pred_region
      %142 = dma.done [#allocation5], 16
    $region41: #{tpu_custom_call.1} parent=1 // pred_fallthru
      _
    %143 = vsyncpa [#allocation4], 1
    %144 = vsyncpa [#allocation7], 1
    %145 = vsyncpa [#allocation5], 1

</llo_original>
